<compile_context>
chip_gen: v5e
topology: v5e:2x2
jax: 0.10.0
libtpu: 0.0.40
codegen_flags: <defaults>
</compile_context>

<pallas_src>
import math
import functools

import jax
import jax.numpy as jnp
from jax.experimental import pallas as pl
from jax.experimental.pallas import tpu as pltpu

NEG_SLOPE = 0.2
ACT_SCALE = math.sqrt(2.0)


# ----------------------------- Pallas kernel -----------------------------
def _fused_leaky_relu_kernel(x_ref, b_ref, o_ref, *, neg_slope, scale):
    """x_ref: (1, C, TS)   b_ref: (C, 1)   o_ref: (1, C, TS)

    One vadd (bias broadcast along lanes), one compare/select, one vmul
    (scale / neg_slope*scale folded as trace-time constants).
    """
    t = x_ref[...] + b_ref[...]                       # (1,C,TS) + (C,1) -> (1,C,TS)
    o_ref[...] = t * jnp.where(t >= 0.0, scale, neg_slope * scale)


# ------------------------------- wrapper -------------------------------
def fused_leaky_relu(x, bias, negative_slope=NEG_SLOPE, scale=ACT_SCALE,
                     spatial_tile=2048):
    """Matches torch fused_leaky_relu(input, bias, negative_slope, scale).

    x: (N, C, *spatial) — bias is broadcast over dim 1. Returns same shape/dtype.
    """
    orig_shape = x.shape
    N, C = orig_shape[0], orig_shape[1]
    hw = 1
    for d in orig_shape[2:]:
        hw *= d

    # channels on sublanes, flattened spatial on lanes (free reshape, no transpose)
    x3 = x.reshape(N, C, hw)

    # lane-dense spatial tile: multiple of 128, capped at `spatial_tile`
    ts = min(int(spatial_tile), pl.cdiv(hw, 128) * 128)
    hw_pad = pl.cdiv(hw, ts) * ts
    if hw_pad != hw:
        x3 = jnp.pad(x3, ((0, 0), (0, 0), (0, hw_pad - hw)))

    b = bias.reshape(C, 1).astype(x3.dtype)

    kern = functools.partial(_fused_leaky_relu_kernel,
                             neg_slope=float(negative_slope),
                             scale=float(scale))

    out = pl.pallas_call(
        kern,
        out_shape=jax.ShapeDtypeStruct((N, C, hw_pad), x3.dtype),
        grid_spec=pltpu.PrefetchScalarGridSpec(
            num_scalar_prefetch=0,
            grid=(N, hw_pad // ts),
            in_specs=[
                pl.BlockSpec((1, C, ts), lambda n, s: (n, 0, s)),
                pl.BlockSpec((C, 1), lambda n, s: (0, 0)),
            ],
            out_specs=pl.BlockSpec((1, C, ts), lambda n, s: (n, 0, s)),
        ),
        compiler_params=pltpu.CompilerParams(
            dimension_semantics=("parallel", "parallel"),
            vmem_limit_bytes=32 << 20,   # safe on v5e/v6e (128 MiB) and v7x (64 MiB)
        ),
    )(x3, b)

    if hw_pad != hw:
        out = out[:, :, :hw]
    return out.reshape(orig_shape)


# ------------------------------- reference -------------------------------
def _reference(x, bias, negative_slope=NEG_SLOPE, scale=ACT_SCALE):
    t = x + bias.reshape((1, -1) + (1,) * (x.ndim - 2))
    return scale * jnp.where(t >= 0, t, negative_slope * t)


# --------------------------------- main ---------------------------------
if __name__ == "__main__":
    key = jax.random.PRNGKey(0)
    kx, kb = jax.random.split(key)

    # FusedLeakyReLU(channel=4) on a (2, 4, 16, 16) activation.
    N, C, H, W = 2, 4, 16, 16
    x = jax.random.normal(kx, (N, C, H, W), dtype=jnp.float32)
    # nn.Parameter init is zeros; use a small random bias to actually exercise
    # the per-channel broadcast-add path.
    bias = 0.1 * jax.random.normal(kb, (C,), dtype=jnp.float32)

    out = fused_leaky_relu(x, bias)
    out = jax.block_until_ready(out)

    ref = _reference(x, bias)
    assert out.shape == x.shape, out.shape
    assert jnp.allclose(out, ref, atol=1e-5, rtol=1e-5), float(jnp.max(jnp.abs(out - ref)))

    print("KERNEL_OK")
</pallas_src>

<mosaic_0001>
module attributes {stable_mosaic.version = 11 : i64} {
  func.func @_fused_leaky_relu_kernel(%arg0: i32, %arg1: i32, %arg2: memref<1x4x256xf32, #tpu.memory_space<vmem>>, %arg3: memref<4x1xf32, #tpu.memory_space<vmem>>, %arg4: memref<1x4x256xf32, #tpu.memory_space<vmem>>) attributes {dimension_semantics = [#tpu.dimension_semantics<parallel>, #tpu.dimension_semantics<parallel>], iteration_bounds = array<i64: 2, 1>, scalar_prefetch = 0 : i64, scratch_operands = 0 : i64, tpu.core_type = #tpu.core_type<tc>, window_params = [{transform_indices = @transform_0, window_bounds = array<i64: 1, 4, 256>}, {pipeline_mode = #tpu.pipeline_mode<synchronous>, transform_indices = @transform_1, window_bounds = array<i64: 4, 1>}, {transform_indices = @transform_2, window_bounds = array<i64: 1, 4, 256>}]} {
    %c0 = arith.constant 0 : index
    %c0_0 = arith.constant 0 : index
    %c0_1 = arith.constant 0 : index
    %0 = vector.load %arg2[%c0, %c0_0, %c0_1] : memref<1x4x256xf32, #tpu.memory_space<vmem>>, vector<1x4x256xf32>
    %c0_2 = arith.constant 0 : index
    %c0_3 = arith.constant 0 : index
    %1 = vector.load %arg3[%c0_2, %c0_3] : memref<4x1xf32, #tpu.memory_space<vmem>>, vector<4x1xf32>
    %2 = vector.shape_cast %1 : vector<4x1xf32> to vector<1x4x1xf32>
    %3 = vector.broadcast %2 : vector<1x4x1xf32> to vector<1x4x256xf32>
    %4 = arith.addf %0, %3 : vector<1x4x256xf32>
    %cst = arith.constant 0.000000e+00 : f32
    %5 = vector.broadcast %cst : f32 to vector<1x4x256xf32>
    %6 = arith.cmpf oge, %4, %5 : vector<1x4x256xf32>
    %cst_4 = arith.constant 1.41421354 : f32
    %cst_5 = arith.constant 0.282842726 : f32
    %7 = vector.broadcast %cst_4 : f32 to vector<1x4x256xf32>
    %8 = vector.broadcast %cst_5 : f32 to vector<1x4x256xf32>
    %9 = arith.select %6, %7, %8 : vector<1x4x256xi1>, vector<1x4x256xf32>
    %10 = arith.mulf %4, %9 : vector<1x4x256xf32>
    %c0_6 = arith.constant 0 : index
    %c0_7 = arith.constant 0 : index
    %c0_8 = arith.constant 0 : index
    %11 = vector.load %arg4[%c0_6, %c0_7, %c0_8] : memref<1x4x256xf32, #tpu.memory_space<vmem>>, vector<1x4x256xf32>
    tpu.vector_store %arg4[%c0_6, %c0_7, %c0_8], %10 {strides = array<i32>} : memref<1x4x256xf32, #tpu.memory_space<vmem>>, vector<1x4x256xf32>,
    return
  }
  func.func @transform_0(%arg0: i32, %arg1: i32) -> (i32, i32, i32) {
    %c0_i32 = arith.constant 0 : i32
    %c0_i32_0 = arith.constant 0 : i32
    return %arg0, %c0_i32, %arg1 : i32, i32, i32
  }
  func.func @transform_1(%arg0: i32, %arg1: i32) -> (i32, i32) {
    %c0_i32 = arith.constant 0 : i32
    %c0_i32_0 = arith.constant 0 : i32
    %c0_i32_1 = arith.constant 0 : i32
    return %c0_i32, %c0_i32_0 : i32, i32
  }
  func.func @transform_2(%arg0: i32, %arg1: i32) -> (i32, i32, i32) {
    %c0_i32 = arith.constant 0 : i32
    %c0_i32_0 = arith.constant 0 : i32
    return %arg0, %c0_i32, %arg1 : i32, i32, i32
  }
}

</mosaic_0001>

<llo_original>
// kernel: tpu_custom_call.1
$region0: #{tpu_custom_call.1}
  #allocation0 [shape = 'u32[]', space=smem, size = 0x4, offset = 0x4, fixed_abs, tag = 'smem constant byte address 0x4 - core index']
  #allocation1 [shape = 'u32[72,128]{1,0:T(1,128)}', space=vmem, size = 0x9000, scoped, tag = 'internal scratch']
  %s0 = inlined_call_operand.hbm [shape: f32[2,4,256], index: 0, kind: input, shape index: {}]
  %s1 = inlined_call_operand.vmem [shape: f32[4,1], index: 1, kind: input, shape index: {}]
  %s2 = inlined_call_operand.hbm [shape: f32[2,4,256], index: 2, kind: output, shape index: {}]
  %s3 = sld [smem:[#allocation0]]
  $region45: #{tpu_custom_call.1} parent=0
    _
  %s5 = ssub.s32 1, %s3
  %s6 = scalar_select 0, %s5, %s3
  $region1: #{tpu_custom_call.1} parent=0
    #allocation2 [shape = 'u8[8192]{0}', space=vmem, size = 0x2000, scoped, tag = 'input window, operand 0']
    #allocation3 [shape = 's32[2]{0}', space=sflag, size = 0x8, scoped, tag = 'scoped memory for tpu_custom_call.1']
    #allocation4 [shape = 's32[2]{0}', space=sflag, size = 0x8, scoped, tag = 'scoped memory for tpu_custom_call.1']
    #allocation5 [shape = 'u8[8192]{0}', space=vmem, size = 0x2000, scoped, tag = 'output window, operand 0']
    %7 = vsyncpa [#allocation3], 0
    %s8 = scalar_lea.sflag [#allocation3], 1
    %9 = vsyncpa %s8, 0
    %10 = vsyncpa [#allocation4], 0
    %s11 = scalar_lea.sflag [#allocation4], 1
    %12 = vsyncpa %s11, 0
    loop: start=0, step=1, limit=4
    $region2: #{tpu_custom_call.1} parent=1 // loop_pre_header
      _
    $region3: #{tpu_custom_call.1} parent=1 // loop_header
      %s14 = sphi 0, %s18
      %p15 = scmp.ge.s32.totalorder %s14, 4
      %s21 = sphi 0, %s33
      %s22 = sphi 0, %s29
      %s23 = sphi 0, %s21
      %s24 = sphi 0, %s22
      %s25 = sphi 0, %s23
      %s26 = sphi 0, %s24
      %s38 = sphi 0, %s40
      %s41 = sphi 0, %s38
      %s42 = sphi 0, %s41
      %s58 = sphi 0, %s42
      %s62 = sphi 0, %s62
      %s64 = sphi 0, %s62
      %s65 = sphi 0, %s64
      %s79 = sphi 0, %s65
      %s87 = sphi 0, %s89
      %s90 = sphi 0, %s87
      %s91 = sphi 0, %s90
      %s107 = sphi 0, %s91
    $region4: #{tpu_custom_call.1} parent=1 // loop_header_branch
      %17 = sbr.rel (%p15) target = $region8
    $region5: #{tpu_custom_call.1} parent=1 // loop_body
      %s19 = ssub.s32 %s14, 1
      %s20 = ssub.s32 %s14, 2
      %s27 = sadd.s32 1, %s22
      %p28 = scmp.ge.s32.totalorder %s27, 1
      %s29 = scalar_select %p28, 0, %s27
      %s30 = sadd.s32 1, %s21
      %s31 = scalar_select %p28, %s30, %s21
      %p32 = scmp.ge.s32.totalorder %s31, 2
      %s33 = scalar_select %p32, 0, %s31
      %s34 = ssub.s32 %s21, %s33
      %s35 = ssub.s32 %s22, %s29
      %s36 = sor.u32 %s34, %s35
      %p37 = scmp.eq.s32.totalorder %s36, 0
      %s39 = sadd.s32 %s38, 1
      %s40 = scalar_select %p37, %s38, %s39
      %p43 = pneg %p37
      %p44 = scmp.eq.s32.totalorder %s14, 1
      %p45 = por %p43, %p44
      %p46 = scmp.ne.s32.totalorder %s38, %s41
      %p47 = scmp.eq.s32.totalorder %s14, 0
      %p48 = por %p46, %p47
      %p49 = scmp.ne.s32.totalorder %s38, %s41
      %p50 = scmp.eq.s32.totalorder %s19, 1
      %p51 = por %p49, %p50
      %p52 = scmp.ne.s32.totalorder %s41, %s42
      %p53 = scmp.eq.s32.totalorder %s19, 0
      %p54 = por %p52, %p53
      %p55 = scmp.ne.s32.totalorder %s41, %s42
      %p56 = scmp.eq.s32.totalorder %s20, 1
      %p57 = por %p55, %p56
      %p59 = scmp.ne.s32.totalorder %s42, %s58
      %p60 = scmp.eq.s32.totalorder %s20, 0
      %p61 = por %p59, %p60
      %s63 = sadd.s32 %s62, 1
      %p66 = scmp.eq.s32.totalorder %s14, 1
      %p67 = scmp.ne.s32.totalorder %s62, %s64
      %p68 = scmp.eq.s32.totalorder %s14, 0
      %p69 = por %p67, %p68
      %p70 = scmp.ne.s32.totalorder %s62, %s64
      %p71 = scmp.eq.s32.totalorder %s19, 1
      %p72 = por %p70, %p71
      %p73 = scmp.ne.s32.totalorder %s64, %s65
      %p74 = scmp.eq.s32.totalorder %s19, 0
      %p75 = por %p73, %p74
      %p76 = scmp.ne.s32.totalorder %s64, %s65
      %p77 = scmp.eq.s32.totalorder %s20, 1
      %p78 = por %p76, %p77
      %p80 = scmp.ne.s32.totalorder %s65, %s79
      %p81 = scmp.eq.s32.totalorder %s20, 0
      %p82 = por %p80, %p81
      %s83 = ssub.s32 %s21, %s33
      %s84 = ssub.s32 %s22, %s29
      %s85 = sor.u32 %s83, %s84
      %p86 = scmp.eq.s32.totalorder %s85, 0
      %s88 = sadd.s32 %s87, 1
      %s89 = scalar_select %p86, %s87, %s88
      %p92 = pneg %p86
      %p93 = scmp.eq.s32.totalorder %s14, 1
      %p94 = por %p92, %p93
      %p95 = scmp.ne.s32.totalorder %s87, %s90
      %p96 = scmp.eq.s32.totalorder %s14, 0
      %p97 = por %p95, %p96
      %p98 = scmp.ne.s32.totalorder %s87, %s90
      %p99 = scmp.eq.s32.totalorder %s19, 1
      %p100 = por %p98, %p99
      %p101 = scmp.ne.s32.totalorder %s90, %s91
      %p102 = scmp.eq.s32.totalorder %s19, 0
      %p103 = por %p101, %p102
      %p104 = scmp.ne.s32.totalorder %s90, %s91
      %p105 = scmp.eq.s32.totalorder %s20, 1
      %p106 = por %p104, %p105
      %p108 = scmp.ne.s32.totalorder %s91, %s107
      %p109 = scmp.eq.s32.totalorder %s20, 0
      %p110 = por %p108, %p109
      %p111 = scmp.le.s32.totalorder 1, %s14
      %p112 = scmp.lt.s32.totalorder %s14, 3
      %p113 = pnand %p111, %p112
      %p114 = pneg %p113
      // Predicated region
      $region9: #{tpu_custom_call.1} parent=5 // pred_check
        _
      $region10: #{tpu_custom_call.1} parent=5 // pred_check_branch
        %116 = sbr.rel (%p113) target = $region12
      $region11: #{tpu_custom_call.1} parent=5 // pred_region
        %s117 = ssub.s32 %s14, 1
        // Predicated region
        $region13: #{tpu_custom_call.1} parent=11 // pred_check
          %p118 = pneg %p75
        $region14: #{tpu_custom_call.1} parent=11 // pred_check_branch
          %120 = sbr.rel (%p118) target = $region16
        $region15: #{tpu_custom_call.1} parent=11 // pred_region
          _
        $region16: #{tpu_custom_call.1} parent=11 // pred_fallthru
          _
      $region12: #{tpu_custom_call.1} parent=5 // pred_fallthru
        _
      %p121 = scmp.lt.s32.totalorder %s14, 2
      // Predicated region
      $region17: #{tpu_custom_call.1} parent=5 // pred_check
        %p122 = pneg %p121
      $region18: #{tpu_custom_call.1} parent=5 // pred_check_branch
        %124 = sbr.rel (%p122) target = $region20
      $region19: #{tpu_custom_call.1} parent=5 // pred_region
        // Predicated region
        $region21: #{tpu_custom_call.1} parent=19 // pred_check
          %p125 = pneg %p48
        $region22: #{tpu_custom_call.1} parent=19 // pred_check_branch
          %127 = sbr.rel (%p125) target = $region24
        $region23: #{tpu_custom_call.1} parent=19 // pred_region
          %s128 = sand.u32 %s38, 1
          %s129 = scalar_lea.sflag [#allocation3], %s128
          %s130 = sand.u32 %s38, 1
          %s131 = smul.addr %s130, 8
          %s132 = scalar_lea.vmem [#allocation2], %s131
          %s133 = smul.u32 2, %s22
          %135 = vsyncadd %s129, 0
          %s136 = smul.addr %s21, 2
          %s137 = sadd.s32 %s133, %s136
          %s138 = smul.addr %s137, 4
          %s139 = scalar_lea.hbm %s0, %s138
          %s141 = sshll.u32 %s139, 4
          %s142 = int_to_ptr.hbm [resolvable:$true] %s141
          %s143 = sshll.u32 %s132, 4
          %s144 = int_to_ptr.vmem [resolvable:$true] %s143
          %146 = dma.hbm_to_vmem [thread:$0]  %s142, 128, %s144, %s129
        $region24: #{tpu_custom_call.1} parent=19 // pred_fallthru
          _
      $region20: #{tpu_custom_call.1} parent=5 // pred_fallthru
        _
      %p147 = scmp.le.s32.totalorder 1, %s14
      %p148 = scmp.lt.s32.totalorder %s14, 3
      %p149 = pnand %p147, %p148
      %p150 = pneg %p149
      // Predicated region
      $region25: #{tpu_custom_call.1} parent=5 // pred_check
        _
      $region26: #{tpu_custom_call.1} parent=5 // pred_check_branch
        %152 = sbr.rel (%p149) target = $region28
      $region27: #{tpu_custom_call.1} parent=5 // pred_region
        %s153 = ssub.s32 %s14, 1
        %s154 = sand.u32 %s41, 1
        %s155 = scalar_lea.sflag [#allocation3], %s154
        %s156 = sand.u32 %s41, 1
        %s157 = smul.addr %s156, 8
        %s158 = scalar_lea.vmem [#allocation2], %s157
        // Predicated region
        $region29: #{tpu_custom_call.1} parent=27 // pred_check
          %p159 = pneg %p54
        $region30: #{tpu_custom_call.1} parent=27 // pred_check_branch
          %161 = sbr.rel (%p159) target = $region32
        $region31: #{tpu_custom_call.1} parent=27 // pred_region
          %163 = dma.done %s155, 128
        $region32: #{tpu_custom_call.1} parent=27 // pred_fallthru
          _
        %s164 = sand.u32 %s41, 1
        %s165 = scalar_lea.sflag [#allocation3], %s164
        %s166 = sand.u32 %s41, 1
        %s167 = smul.addr %s166, 8
        %s168 = scalar_lea.vmem [#allocation2], %s167
        %p169 = pneg %p54
        %p170 = pneg %p51
        %p171 = pneg %p75
        %p172 = pneg %p72
        %p173 = pneg %p103
        %p174 = pneg %p100
        %s175 = sand.u32 %s90, 1
        %s176 = scalar_lea.sflag [#allocation4], %s175
        %s177 = sand.u32 %s90, 1
        %s178 = smul.addr %s177, 8
        %s179 = scalar_lea.vmem [#allocation5], %s178
        %s180 = smul.u32 2, %s24
        %s181 = smul.u32 2, %s24
        %v182 = vld [vmem:[%s158] sm:$0xff]
        %v183 = vld [vmem:[%s1] sm:$0xf]
        %185 = vset.pattern.permute.xlu0 0
        %186 = vperm.xlu0 %185, %v183
        %v187 = vpop.permute.xlu0 %186
        %v189 = vunpack.c.l.s4 839922192
        %v190 = vunpack.c.0.s8 %v189
        %v191 = vperm.slane %v187, %v190
        %v193 = vadd.f32 %v182, %v191
        %vm194 = vcmp.ge.f32.partialorder %v193, 0.0
        %v195 = vsel %vm194, 1.4142135, 0.28284273
        %v196 = vmul.f32 %v193, %v195
        %197 = vst [vmem:[%s179] sm:$0xff] %v196
        %s198 = sand.u32 %s90, 1
        %s199 = scalar_lea.sflag [#allocation4], %s198
        %s200 = sand.u32 %s90, 1
        %s201 = smul.addr %s200, 8
        %s202 = scalar_lea.vmem [#allocation5], %s201
        // Predicated region
        $region33: #{tpu_custom_call.1} parent=27 // pred_check
          %p203 = pneg %p100
        $region34: #{tpu_custom_call.1} parent=27 // pred_check_branch
          %205 = sbr.rel (%p203) target = $region36
        $region35: #{tpu_custom_call.1} parent=27 // pred_region
          %s206 = smul.u32 2, %s24
          %208 = vsyncadd %s199, 0
          %s209 = smul.addr %s23, 2
          %s210 = sadd.s32 %s206, %s209
          %s211 = smul.addr %s210, 4
          %s212 = scalar_lea.hbm %s2, %s211
          %s214 = sshll.u32 %s202, 4
          %s215 = int_to_ptr.vmem [resolvable:$true] %s214
          %s216 = sshll.u32 %s212, 4
          %s217 = int_to_ptr.hbm [resolvable:$true] %s216
          %219 = dma.vmem_to_hbm [thread:$0]  %s215, 128, %s217, %s199
        $region36: #{tpu_custom_call.1} parent=27 // pred_fallthru
          _
      $region28: #{tpu_custom_call.1} parent=5 // pred_fallthru
        _
      %p220 = scmp.le.s32.totalorder 2, %s14
      // Predicated region
      $region37: #{tpu_custom_call.1} parent=5 // pred_check
        %p221 = pneg %p220
      $region38: #{tpu_custom_call.1} parent=5 // pred_check_branch
        %223 = sbr.rel (%p221) target = $region40
      $region39: #{tpu_custom_call.1} parent=5 // pred_region
        %s224 = ssub.s32 %s14, 2
        // Predicated region
        $region41: #{tpu_custom_call.1} parent=39 // pred_check
          %p225 = pneg %p106
        $region42: #{tpu_custom_call.1} parent=39 // pred_check_branch
          %227 = sbr.rel (%p225) target = $region44
        $region43: #{tpu_custom_call.1} parent=39 // pred_region
          %s228 = sand.u32 %s91, 1
          %s229 = scalar_lea.sflag [#allocation4], %s228
          %s230 = sand.u32 %s91, 1
          %s231 = smul.addr %s230, 8
          %s232 = scalar_lea.vmem [#allocation5], %s231
          %234 = dma.done %s229, 128
        $region44: #{tpu_custom_call.1} parent=39 // pred_fallthru
          _
      $region40: #{tpu_custom_call.1} parent=5 // pred_fallthru
        _
    $region6: #{tpu_custom_call.1} parent=1 // loop_footer
      %s18 = sadd.s32 1, %s14
    $region7: #{tpu_custom_call.1} parent=1 // loop_footer_branch
      %13 = sbr.rel target = $region3
    $region8: #{tpu_custom_call.1} parent=1 // loop_exit
      _
    %235 = vsyncpa [#allocation3], 1
    %s236 = scalar_lea.sflag [#allocation3], 1
    %237 = vsyncpa %s236, 1
    %238 = vsyncpa [#allocation4], 1
    %s239 = scalar_lea.sflag [#allocation4], 1
    %240 = vsyncpa %s239, 1

</llo_original>
